<compile_context>
chip_gen: v7x
topology: tpu7x:2x2x1
jax: 0.10.0
libtpu: 0.0.40
codegen_flags: <defaults>
</compile_context>

<pallas_src>
import jax
import jax.numpy as jnp
from jax.experimental import pallas as pl
from jax.experimental.pallas import tpu as pltpu


def _round_up(x, m):
    return ((x + m - 1) // m) * m


def deepfm_kernel(x_ref, s_ref, w1_ref, b1_ref, w2_ref, b2_ref, w3_ref, b3_ref,
                  out_ref):
    x = x_ref[...]                                                  # (TB, F*D) f32

    # ---- Factorization Machine on the lane-dense flattened tile ----
    # s[b, d] = sum_f emb[b, f, d]  via x @ S, S[f*D+d, d] = 1 (zero-padded to Dp).
    s = jnp.dot(x, s_ref[...], preferred_element_type=jnp.float32)  # (TB, Dp)
    square_of_sum = jnp.sum(s * s, axis=-1, keepdims=True)          # (TB, 1)
    sum_of_square = jnp.sum(x * x, axis=-1, keepdims=True)          # (TB, 1) = sum_{f,d} emb^2
    fm = 0.5 * (square_of_sum - sum_of_square)                      # (TB, 1)

    # ---- MLP: Linear -> ReLU -> Linear -> ReLU -> Linear(., 1) ----
    h = jnp.dot(x, w1_ref[...], preferred_element_type=jnp.float32) + b1_ref[...]
    h = jnp.maximum(h, 0.0)                                         # (TB, H1p)
    h = jnp.dot(h, w2_ref[...], preferred_element_type=jnp.float32) + b2_ref[...]
    h = jnp.maximum(h, 0.0)                                         # (TB, H2p)
    # Final N=1 layer as VPU mul + XLU lane-reduce instead of a lane-1 MXU matmul.
    dnn = jnp.sum(h * w3_ref[...], axis=-1, keepdims=True) + b3_ref[...]  # (TB, 1)

    out_ref[...] = dnn + fm


def deepfm_forward(x_idx, params, *, batch_tile=512):
    """x_idx: int32 (B, F) feature indices. Returns (B, 1) float32 logits."""
    emb_table = params["embedding"]                 # (feature_num, D)
    B, F = x_idx.shape
    D = emb_table.shape[1]
    FD = F * D

    # TODO(synk): fuse the embedding gather into the kernel (scalar-prefetched
    # indices + manual DMA row gather) so emb is never materialized in HBM for
    # large tables; kept as XLA glue here for robustness.
    emb = jnp.take(emb_table, x_idx, axis=0)        # (B, F, D)
    x_dnn = emb.reshape(B, FD)                      # (B, F*D) -- single copy fed to the kernel

    # ---- Zero-pad MLP hidden dims to lane-dense multiples of 128 (output is exact:
    #      padded columns give ReLU(0)=0 and multiply into zero weights). ----
    H1 = params["w1"].shape[1]
    H2 = params["w2"].shape[1]
    H1p = _round_up(H1, 128)
    H2p = _round_up(H2, 128)
    w1 = jnp.pad(params["w1"], ((0, 0), (0, H1p - H1)))             # (FD, H1p)
    b1 = jnp.pad(params["b1"], ((0, 0), (0, H1p - H1)))             # (1, H1p)
    w2 = jnp.pad(params["w2"], ((0, H1p - H1), (0, H2p - H2)))      # (H1p, H2p)
    b2 = jnp.pad(params["b2"], ((0, 0), (0, H2p - H2)))             # (1, H2p)
    w3 = jnp.pad(params["w3"], ((0, H2p - H2), (0, 0))).T           # (1, H2p) row vector
    b3 = params["b3"]                                               # (1, 1)

    # ---- FM field-summation matrix S[f*D + d, d] = 1, lane-padded to Dp ----
    Dp = _round_up(D, 128)
    S = (jnp.arange(FD, dtype=jnp.int32)[:, None] % D
         == jnp.arange(Dp, dtype=jnp.int32)[None, :]).astype(jnp.float32)   # (FD, Dp)

    # ---- Batch tiling (grid over batch, weights resident) ----
    TB = min(B, batch_tile)
    if TB != B and TB % 8 != 0:
        TB = _round_up(TB, 8)
    Bp = _round_up(B, TB)
    if Bp != B:
        x_dnn = jnp.pad(x_dnn, ((0, Bp - B), (0, 0)))
    grid = (Bp // TB,)

    def tiled(shape):
        return pl.BlockSpec(shape, lambda i: (i, 0))

    def resident(arr):
        return pl.BlockSpec(arr.shape, lambda i: (0, 0))

    out = pl.pallas_call(
        deepfm_kernel,
        out_shape=jax.ShapeDtypeStruct((Bp, 1), jnp.float32),
        grid=grid,
        in_specs=[
            tiled((TB, FD)),          # x_dnn: streamed per batch tile
            resident(S),              # FM summation matrix (resident)
            resident(w1), resident(b1),
            resident(w2), resident(b2),
            resident(w3), resident(b3),
        ],
        out_specs=tiled((TB, 1)),
        compiler_params=pltpu.CompilerParams(
            dimension_semantics=("parallel",),   # shard batch axis across TCs (v7x)
        ),
    )(x_dnn, S, w1, b1, w2, b2, w3, b3)
    return out[:B]


def init_params(key, feature_num, field_num, latent_dim, mlp_dims):
    dnn_dim = field_num * latent_dim
    keys = jax.random.split(key, 8)
    h1, h2 = mlp_dims
    scale = 0.1
    params = {
        "embedding": scale * jax.random.normal(keys[0], (feature_num, latent_dim), jnp.float32),
        "w1": scale * jax.random.normal(keys[1], (dnn_dim, h1), jnp.float32),
        "b1": scale * jax.random.normal(keys[2], (1, h1), jnp.float32),
        "w2": scale * jax.random.normal(keys[3], (h1, h2), jnp.float32),
        "b2": scale * jax.random.normal(keys[4], (1, h2), jnp.float32),
        "w3": scale * jax.random.normal(keys[5], (h2, 1), jnp.float32),
        "b3": scale * jax.random.normal(keys[6], (1, 1), jnp.float32),
    }
    return params


def deepfm_reference(x_idx, params):
    emb = jnp.take(params["embedding"], x_idx, axis=0)
    sum_f = jnp.sum(emb, axis=1)
    fm = 0.5 * jnp.sum(sum_f ** 2 - jnp.sum(emb ** 2, axis=1), axis=1, keepdims=True)
    x = emb.reshape(emb.shape[0], -1)
    h = jnp.maximum(x @ params["w1"] + params["b1"], 0.0)
    h = jnp.maximum(h @ params["w2"] + params["b2"], 0.0)
    dnn = h @ params["w3"] + params["b3"]
    return dnn + fm


if __name__ == "__main__":
    # args: dim=8, field=4, feature=32, mlp_dims=(32, 16), mlp_dropout=0.0 (eval), mlp_bn=False
    B, FIELD, DIM, FEATURE = 8, 4, 8, 32
    MLP_DIMS = (32, 16)

    key = jax.random.PRNGKey(0)
    k_params, k_x = jax.random.split(key)
    params = init_params(k_params, FEATURE, FIELD, DIM, MLP_DIMS)
    x_idx = jax.random.randint(k_x, (B, FIELD), 0, FEATURE, dtype=jnp.int32)

    out = deepfm_forward(x_idx, params)
    out = jax.block_until_ready(out)

    ref = deepfm_reference(x_idx, params)
    assert out.shape == (B, 1)
    assert jnp.allclose(out, ref, atol=2e-5, rtol=1e-5), "mismatch vs reference"

    print("KERNEL_OK")
</pallas_src>

<mosaic_0001>
module attributes {stable_mosaic.version = 11 : i64} {
  func.func @deepfm_kernel(%arg0: i32, %arg1: memref<8x32xf32, #tpu.memory_space<vmem>>, %arg2: memref<32x128xf32, #tpu.memory_space<vmem>>, %arg3: memref<32x128xf32, #tpu.memory_space<vmem>>, %arg4: memref<1x128xf32, #tpu.memory_space<vmem>>, %arg5: memref<128x128xf32, #tpu.memory_space<vmem>>, %arg6: memref<1x128xf32, #tpu.memory_space<vmem>>, %arg7: memref<1x128xf32, #tpu.memory_space<vmem>>, %arg8: memref<1x1xf32, #tpu.memory_space<vmem>>, %arg9: memref<8x1xf32, #tpu.memory_space<vmem>>) attributes {dimension_semantics = [#tpu.dimension_semantics<parallel>], iteration_bounds = array<i64: 1>, scalar_prefetch = 0 : i64, scratch_operands = 0 : i64, tpu.core_type = #tpu.core_type<tc>, window_params = [{transform_indices = @transform_0, window_bounds = array<i64: 8, 32>}, {pipeline_mode = #tpu.pipeline_mode<synchronous>, transform_indices = @transform_1, window_bounds = array<i64: 32, 128>}, {pipeline_mode = #tpu.pipeline_mode<synchronous>, transform_indices = @transform_2, window_bounds = array<i64: 32, 128>}, {pipeline_mode = #tpu.pipeline_mode<synchronous>, transform_indices = @transform_3, window_bounds = array<i64: 1, 128>}, {pipeline_mode = #tpu.pipeline_mode<synchronous>, transform_indices = @transform_4, window_bounds = array<i64: 128, 128>}, {pipeline_mode = #tpu.pipeline_mode<synchronous>, transform_indices = @transform_5, window_bounds = array<i64: 1, 128>}, {pipeline_mode = #tpu.pipeline_mode<synchronous>, transform_indices = @transform_6, window_bounds = array<i64: 1, 128>}, {pipeline_mode = #tpu.pipeline_mode<synchronous>, transform_indices = @transform_7, window_bounds = array<i64: 1, 1>}, {transform_indices = @transform_8, window_bounds = array<i64: 8, 1>}]} {
    %c0 = arith.constant 0 : index
    %c0_0 = arith.constant 0 : index
    %0 = vector.load %arg1[%c0, %c0_0] : memref<8x32xf32, #tpu.memory_space<vmem>>, vector<8x32xf32>
    %c0_1 = arith.constant 0 : index
    %c0_2 = arith.constant 0 : index
    %1 = vector.load %arg2[%c0_1, %c0_2] : memref<32x128xf32, #tpu.memory_space<vmem>>, vector<32x128xf32>
    %cst = arith.constant dense<0.000000e+00> : vector<8x128xf32>
    %2 = tpu.matmul %0, %1, %cst {dimension_numbers = #tpu.dot_dimension_numbers<[1], [0], [0], [1], [0, 0, 1, 1], [], []>} : vector<8x32xf32>, vector<32x128xf32>, vector<8x128xf32> -> vector<8x128xf32>
    %3 = arith.mulf %2, %2 : vector<8x128xf32>
    %cst_3 = arith.constant dense<0.000000e+00> : vector<8xf32>
    %4 = vector.multi_reduction <add>, %3, %cst_3 [1] : vector<8x128xf32> to vector<8xf32>
    %5 = vector.shape_cast %4 : vector<8xf32> to vector<8x1xf32>
    %6 = arith.mulf %0, %0 : vector<8x32xf32>
    %cst_4 = arith.constant dense<0.000000e+00> : vector<8xf32>
    %7 = vector.multi_reduction <add>, %6, %cst_4 [1] : vector<8x32xf32> to vector<8xf32>
    %8 = vector.shape_cast %7 : vector<8xf32> to vector<8x1xf32>
    %9 = arith.subf %5, %8 : vector<8x1xf32>
    %cst_5 = arith.constant 5.000000e-01 : f32
    %10 = vector.broadcast %cst_5 : f32 to vector<8x1xf32>
    %11 = arith.mulf %10, %9 : vector<8x1xf32>
    %c0_6 = arith.constant 0 : index
    %c0_7 = arith.constant 0 : index
    %12 = vector.load %arg3[%c0_6, %c0_7] : memref<32x128xf32, #tpu.memory_space<vmem>>, vector<32x128xf32>
    %cst_8 = arith.constant dense<0.000000e+00> : vector<8x128xf32>
    %13 = tpu.matmul %0, %12, %cst_8 {dimension_numbers = #tpu.dot_dimension_numbers<[1], [0], [0], [1], [0, 0, 1, 1], [], []>} : vector<8x32xf32>, vector<32x128xf32>, vector<8x128xf32> -> vector<8x128xf32>
    %c0_9 = arith.constant 0 : index
    %c0_10 = arith.constant 0 : index
    %14 = vector.load %arg4[%c0_9, %c0_10] : memref<1x128xf32, #tpu.memory_space<vmem>>, vector<1x128xf32>
    %15 = vector.broadcast %14 : vector<1x128xf32> to vector<8x128xf32>
    %16 = arith.addf %13, %15 : vector<8x128xf32>
    %cst_11 = arith.constant 0.000000e+00 : f32
    %17 = vector.broadcast %cst_11 : f32 to vector<8x128xf32>
    %18 = arith.maximumf %16, %17 : vector<8x128xf32>
    %c0_12 = arith.constant 0 : index
    %c0_13 = arith.constant 0 : index
    %19 = vector.load %arg5[%c0_12, %c0_13] : memref<128x128xf32, #tpu.memory_space<vmem>>, vector<128x128xf32>
    %cst_14 = arith.constant dense<0.000000e+00> : vector<8x128xf32>
    %20 = tpu.matmul %18, %19, %cst_14 {dimension_numbers = #tpu.dot_dimension_numbers<[1], [0], [0], [1], [0, 0, 1, 1], [], []>} : vector<8x128xf32>, vector<128x128xf32>, vector<8x128xf32> -> vector<8x128xf32>
    %c0_15 = arith.constant 0 : index
    %c0_16 = arith.constant 0 : index
    %21 = vector.load %arg6[%c0_15, %c0_16] : memref<1x128xf32, #tpu.memory_space<vmem>>, vector<1x128xf32>
    %22 = vector.broadcast %21 : vector<1x128xf32> to vector<8x128xf32>
    %23 = arith.addf %20, %22 : vector<8x128xf32>
    %cst_17 = arith.constant 0.000000e+00 : f32
    %24 = vector.broadcast %cst_17 : f32 to vector<8x128xf32>
    %25 = arith.maximumf %23, %24 : vector<8x128xf32>
    %c0_18 = arith.constant 0 : index
    %c0_19 = arith.constant 0 : index
    %26 = vector.load %arg7[%c0_18, %c0_19] : memref<1x128xf32, #tpu.memory_space<vmem>>, vector<1x128xf32>
    %27 = vector.broadcast %26 : vector<1x128xf32> to vector<8x128xf32>
    %28 = arith.mulf %25, %27 : vector<8x128xf32>
    %cst_20 = arith.constant dense<0.000000e+00> : vector<8xf32>
    %29 = vector.multi_reduction <add>, %28, %cst_20 [1] : vector<8x128xf32> to vector<8xf32>
    %30 = vector.shape_cast %29 : vector<8xf32> to vector<8x1xf32>
    %c0_21 = arith.constant 0 : index
    %c0_22 = arith.constant 0 : index
    %31 = vector.load %arg8[%c0_21, %c0_22] : memref<1x1xf32, #tpu.memory_space<vmem>>, vector<1x1xf32>
    %32 = vector.broadcast %31 : vector<1x1xf32> to vector<8x1xf32>
    %33 = arith.addf %30, %32 : vector<8x1xf32>
    %34 = arith.addf %33, %11 : vector<8x1xf32>
    %c0_23 = arith.constant 0 : index
    %c0_24 = arith.constant 0 : index
    %35 = vector.load %arg9[%c0_23, %c0_24] : memref<8x1xf32, #tpu.memory_space<vmem>>, vector<8x1xf32>
    tpu.vector_store %arg9[%c0_23, %c0_24], %34 {strides = array<i32>} : memref<8x1xf32, #tpu.memory_space<vmem>>, vector<8x1xf32>,
    return
  }
  func.func @transform_0(%arg0: i32) -> (i32, i32) {
    %c0_i32 = arith.constant 0 : i32
    %c0_i32_0 = arith.constant 0 : i32
    return %arg0, %c0_i32 : i32, i32
  }
  func.func @transform_1(%arg0: i32) -> (i32, i32) {
    %c0_i32 = arith.constant 0 : i32
    %c0_i32_0 = arith.constant 0 : i32
    %c0_i32_1 = arith.constant 0 : i32
    return %c0_i32, %c0_i32_0 : i32, i32
  }
  func.func @transform_2(%arg0: i32) -> (i32, i32) {
    %c0_i32 = arith.constant 0 : i32
    %c0_i32_0 = arith.constant 0 : i32
    %c0_i32_1 = arith.constant 0 : i32
    return %c0_i32, %c0_i32_0 : i32, i32
  }
  func.func @transform_3(%arg0: i32) -> (i32, i32) {
    %c0_i32 = arith.constant 0 : i32
    %c0_i32_0 = arith.constant 0 : i32
    %c0_i32_1 = arith.constant 0 : i32
    return %c0_i32, %c0_i32_0 : i32, i32
  }
  func.func @transform_4(%arg0: i32) -> (i32, i32) {
    %c0_i32 = arith.constant 0 : i32
    %c0_i32_0 = arith.constant 0 : i32
    %c0_i32_1 = arith.constant 0 : i32
    return %c0_i32, %c0_i32_0 : i32, i32
  }
  func.func @transform_5(%arg0: i32) -> (i32, i32) {
    %c0_i32 = arith.constant 0 : i32
    %c0_i32_0 = arith.constant 0 : i32
    %c0_i32_1 = arith.constant 0 : i32
    return %c0_i32, %c0_i32_0 : i32, i32
  }
  func.func @transform_6(%arg0: i32) -> (i32, i32) {
    %c0_i32 = arith.constant 0 : i32
    %c0_i32_0 = arith.constant 0 : i32
    %c0_i32_1 = arith.constant 0 : i32
    return %c0_i32, %c0_i32_0 : i32, i32
  }
  func.func @transform_7(%arg0: i32) -> (i32, i32) {
    %c0_i32 = arith.constant 0 : i32
    %c0_i32_0 = arith.constant 0 : i32
    %c0_i32_1 = arith.constant 0 : i32
    return %c0_i32, %c0_i32_0 : i32, i32
  }
  func.func @transform_8(%arg0: i32) -> (i32, i32) {
    %c0_i32 = arith.constant 0 : i32
    %c0_i32_0 = arith.constant 0 : i32
    return %arg0, %c0_i32 : i32, i32
  }
}

</mosaic_0001>

<llo_original>
// kernel: tpu_custom_call.1
$region0: #{tpu_custom_call.1}
  #allocation0 [shape = 'u32[]', space=smem, size = 0x4, offset = 0x4, fixed_abs, tag = 'smem constant byte address 0x4 - core index']
  #allocation1 [shape = 'u32[144,128]{1,0:T(1,128)}', space=vmem, size = 0x12000, scoped, tag = 'internal scratch']
  #allocation2 [shape = 'f32[1,1]{1,0:T(1,128)S(1)}', space=vmem, size = 0x200, scoped, tag = 'scoped memory for tpu_custom_call.1']
  %s0 = inlined_call_operand.hbm [shape: f32[8,32], index: 0, kind: input, shape index: {}]
  %s1 = inlined_call_operand.hbm [shape: f32[32,128], index: 1, kind: input, shape index: {}]
  %s2 = inlined_call_operand.hbm [shape: f32[32,128], index: 2, kind: input, shape index: {}]
  %s3 = inlined_call_operand.vmem [shape: f32[1,128], index: 3, kind: input, shape index: {}]
  %s4 = inlined_call_operand.hbm [shape: f32[128,128], index: 4, kind: input, shape index: {}]
  %s5 = inlined_call_operand.vmem [shape: f32[1,128], index: 5, kind: input, shape index: {}]
  %s6 = inlined_call_operand.vmem [shape: f32[1,128], index: 6, kind: input, shape index: {}]
  %s7 = inlined_call_operand.<no memory space> [shape: f32[1,1], index: 7, kind: input, shape index: {}]
  %s8 = inlined_call_operand.vmem [shape: f32[8,1], index: 8, kind: output, shape index: {}]
  %s9 = sld [smem:[#allocation0]]
  $region58: #{tpu_custom_call.1} parent=0
    _
  %s11 = ssub.s32 1, %s9
  %s12 = scalar_select 0, %s11, %s9
  %v13 = vstv %s7
  %14 = vst [vmem:[#allocation2] sm:$0x1] %v13
  $region1: #{tpu_custom_call.1} parent=0
    #allocation3 [shape = 'u8[4096]{0}', space=vmem, size = 0x1000, scoped, tag = 'input window, operand 0, single buffered']
    #allocation4 [shape = 's32[1]{0}', space=sflag, size = 0x4, scoped, tag = 'scoped memory for tpu_custom_call.1']
    #allocation5 [shape = 'u8[16384]{0}', space=vmem, size = 0x4000, scoped, tag = 'input window, operand 1, single buffered']
    #allocation6 [shape = 's32[1]{0}', space=sflag, size = 0x4, scoped, tag = 'scoped memory for tpu_custom_call.1']
    #allocation7 [shape = 'u8[16384]{0}', space=vmem, size = 0x4000, scoped, tag = 'input window, operand 2, single buffered']
    #allocation8 [shape = 'u8[65536]{0}', space=vmem, size = 0x10000, scoped, tag = 'input window, operand 4, single buffered']
    #allocation9 [shape = 's32[1]{0}', space=sflag, size = 0x4, scoped, tag = 'scoped memory for tpu_custom_call.1']
    %15 = vsyncpa [#allocation4], 0
    %16 = vsyncpa [#allocation6], 0
    %17 = vsyncpa [#allocation9], 0
    // Predicated region
    $region2: #{tpu_custom_call.1} parent=1 // pred_check
      _
    $region3: #{tpu_custom_call.1} parent=1 // pred_check_branch
      %19 = sbr.rel (0) target = $region5
    $region4: #{tpu_custom_call.1} parent=1 // pred_region
      %s21 = ssub.s32 128, 128
      %22 = vsyncadd [#allocation4], %s21
      %s24 = sshll.u32 [#allocation3], 4
      %s25 = int_to_ptr.vmem [resolvable:$true] %s24
      %27 = dma.hbm_to_vmem [thread:$0]  %s0, 128, %s25, [#allocation4]
    $region5: #{tpu_custom_call.1} parent=1 // pred_fallthru
      _
    // Predicated region
    $region6: #{tpu_custom_call.1} parent=1 // pred_check
      _
    $region7: #{tpu_custom_call.1} parent=1 // pred_check_branch
      %29 = sbr.rel (0) target = $region9
    $region8: #{tpu_custom_call.1} parent=1 // pred_region
      %s31 = ssub.s32 512, 512
      %32 = vsyncadd [#allocation6], %s31
      %s33 = sshll.u32 [#allocation5], 4
      %s34 = int_to_ptr.vmem [resolvable:$true] %s33
      %39 = dma.hbm_to_vmem [thread:$0]  %s1, 512, %s34, [#allocation6], 128, 128, 8
    $region9: #{tpu_custom_call.1} parent=1 // pred_fallthru
      _
    // Predicated region
    $region10: #{tpu_custom_call.1} parent=1 // pred_check
      _
    $region11: #{tpu_custom_call.1} parent=1 // pred_check_branch
      %41 = sbr.rel (0) target = $region13
    $region12: #{tpu_custom_call.1} parent=1 // pred_region
      %s43 = ssub.s32 512, 512
      %44 = vsyncadd [#allocation6], %s43
      %s45 = sshll.u32 [#allocation7], 4
      %s46 = int_to_ptr.vmem [resolvable:$true] %s45
      %51 = dma.hbm_to_vmem [thread:$0]  %s2, 512, %s46, [#allocation6], 128, 128, 8
    $region13: #{tpu_custom_call.1} parent=1 // pred_fallthru
      _
    // Predicated region
    $region14: #{tpu_custom_call.1} parent=1 // pred_check
      _
    $region15: #{tpu_custom_call.1} parent=1 // pred_check_branch
      %53 = sbr.rel (0) target = $region17
    $region16: #{tpu_custom_call.1} parent=1 // pred_region
      _
    $region17: #{tpu_custom_call.1} parent=1 // pred_fallthru
      _
    // Predicated region
    $region18: #{tpu_custom_call.1} parent=1 // pred_check
      _
    $region19: #{tpu_custom_call.1} parent=1 // pred_check_branch
      %55 = sbr.rel (0) target = $region21
    $region20: #{tpu_custom_call.1} parent=1 // pred_region
      %s57 = ssub.s32 2048, 2048
      %58 = vsyncadd [#allocation9], %s57
      %s59 = sshll.u32 [#allocation8], 4
      %s60 = int_to_ptr.vmem [resolvable:$true] %s59
      %65 = dma.hbm_to_vmem [thread:$0]  %s4, 2048, %s60, [#allocation9], 128, 128, 8
    $region21: #{tpu_custom_call.1} parent=1 // pred_fallthru
      _
    // Predicated region
    $region22: #{tpu_custom_call.1} parent=1 // pred_check
      _
    $region23: #{tpu_custom_call.1} parent=1 // pred_check_branch
      %67 = sbr.rel (0) target = $region25
    $region24: #{tpu_custom_call.1} parent=1 // pred_region
      _
    $region25: #{tpu_custom_call.1} parent=1 // pred_fallthru
      _
    // Predicated region
    $region26: #{tpu_custom_call.1} parent=1 // pred_check
      _
    $region27: #{tpu_custom_call.1} parent=1 // pred_check_branch
      %69 = sbr.rel (0) target = $region29
    $region28: #{tpu_custom_call.1} parent=1 // pred_region
      _
    $region29: #{tpu_custom_call.1} parent=1 // pred_fallthru
      _
    // Predicated region
    $region30: #{tpu_custom_call.1} parent=1 // pred_check
      _
    $region31: #{tpu_custom_call.1} parent=1 // pred_check_branch
      %71 = sbr.rel (0) target = $region33
    $region32: #{tpu_custom_call.1} parent=1 // pred_region
      _
    $region33: #{tpu_custom_call.1} parent=1 // pred_fallthru
      _
    // Predicated region
    $region34: #{tpu_custom_call.1} parent=1 // pred_check
      _
    $region35: #{tpu_custom_call.1} parent=1 // pred_check_branch
      %73 = sbr.rel (0) target = $region37
    $region36: #{tpu_custom_call.1} parent=1 // pred_region
      %74 = dma.done [#allocation4], 128
    $region37: #{tpu_custom_call.1} parent=1 // pred_fallthru
      _
    // Predicated region
    $region38: #{tpu_custom_call.1} parent=1 // pred_check
      _
    $region39: #{tpu_custom_call.1} parent=1 // pred_check_branch
      %76 = sbr.rel (0) target = $region41
    $region40: #{tpu_custom_call.1} parent=1 // pred_region
      %77 = dma.done [#allocation6], 512
    $region41: #{tpu_custom_call.1} parent=1 // pred_fallthru
      _
    // Predicated region
    $region42: #{tpu_custom_call.1} parent=1 // pred_check
      _
    $region43: #{tpu_custom_call.1} parent=1 // pred_check_branch
      %79 = sbr.rel (0) target = $region45
    $region44: #{tpu_custom_call.1} parent=1 // pred_region
      %80 = dma.done [#allocation6], 512
    $region45: #{tpu_custom_call.1} parent=1 // pred_fallthru
      _
    // Predicated region
    $region46: #{tpu_custom_call.1} parent=1 // pred_check
      _
    $region47: #{tpu_custom_call.1} parent=1 // pred_check_branch
      %82 = sbr.rel (0) target = $region49
    $region48: #{tpu_custom_call.1} parent=1 // pred_region
      %83 = dma.done [#allocation9], 2048
    $region49: #{tpu_custom_call.1} parent=1 // pred_fallthru
      _
    %v84 = vld [vmem:[#allocation3] sm:$0xff]
    %v85 = vld [vmem:[#allocation5] sm:$0xff]
    %v86 = vld [vmem:[#allocation5 + $0x8] sm:$0xff]
    %v87 = vld [vmem:[#allocation5 + $0x10] sm:$0xff]
    %v88 = vld [vmem:[#allocation5 + $0x18] sm:$0xff]
    %vm89 = vcmask 261120
    %v91 = vsel %vm89, %v84, 0
    %93 = vmatprep.subr.mxu0 0.0
    %94 = vmatpush1.msra.mxu0 %v85
    %95 = vmatprep.subr.mxu0 0.0
    %96 = vmatpush1.msra.mxu0 %v86
    %97 = vmatprep.subr.mxu0 0.0
    %98 = vmatpush1.msra.mxu0 %v87
    %99 = vmatprep.subr.mxu0 0.0
    %100 = vmatpush1.msra.mxu0 %v88
    %101 = vmatprep.subr.mxu0 0.0
    %102 = vmatpush1.msra.mxu0 0.0
    %103 = vmatprep.subr.mxu0 0.0
    %104 = vmatpush1.msra.mxu0 0.0
    %105 = vmatprep.subr.mxu0 0.0
    %106 = vmatpush1.msra.mxu0 0.0
    %107 = vmatprep.subr.mxu0 0.0
    %108 = vmatpush1.msra.mxu0 0.0
    %109 = vmatprep.subr.mxu0 0.0
    %110 = vmatpush1.msra.mxu0 0.0
    %111 = vmatprep.subr.mxu0 0.0
    %112 = vmatpush1.msra.mxu0 0.0
    %113 = vmatprep.subr.mxu0 0.0
    %114 = vmatpush1.msra.mxu0 0.0
    %115 = vmatprep.subr.mxu0 0.0
    %116 = vmatpush1.msra.mxu0 0.0
    %117 = vmatprep.subr.mxu0 0.0
    %118 = vmatpush1.msra.mxu0 0.0
    %119 = vmatprep.subr.mxu0 0.0
    %120 = vmatpush1.msra.mxu0 0.0
    %121 = vmatprep.subr.mxu0 0.0
    %122 = vmatpush1.msra.mxu0 0.0
    %123 = vmatprep.subr.mxu0 0.0
    %124 = vmatpush1.msra.mxu0 0.0
    %125 = vmatprep.subr.mxu0 0.0
    %126 = vmatpush1.msra.mxu0 0.0
    %127 = vmatprep.subr.mxu0 0.0
    %128 = vmatpush1.msra.mxu0 0.0
    %129 = vmatprep.subr.mxu0 0.0
    %130 = vmatpush1.msra.mxu0 0.0
    %131 = vmatprep.subr.mxu0 0.0
    %132 = vmatpush1.msra.mxu0 0.0
    %133 = vmatprep.subr.mxu0 0.0
    %134 = vmatpush1.msra.mxu0 0.0
    %135 = vmatprep.subr.mxu0 0.0
    %136 = vmatpush1.msra.mxu0 0.0
    %137 = vmatprep.subr.mxu0 0.0
    %138 = vmatpush1.msra.mxu0 0.0
    %139 = vmatprep.subr.mxu0 0.0
    %140 = vmatpush1.msra.mxu0 0.0
    %141 = vmatprep.subr.mxu0 0.0
    %142 = vmatpush1.msra.mxu0 0.0
    %143 = vmatprep.subr.mxu0 0.0
    %144 = vmatpush1.msra.mxu0 0.0
    %145 = vmatprep.subr.mxu0 0.0
    %146 = vmatpush1.msra.mxu0 0.0
    %147 = vmatprep.subr.mxu0 0.0
    %148 = vmatpush1.msra.mxu0 0.0
    %149 = vmatprep.subr.mxu0 0.0
    %150 = vmatpush1.msra.mxu0 0.0
    %151 = vmatprep.subr.mxu0 0.0
    %152 = vmatpush1.msra.mxu0 0.0
    %153 = vmatprep.subr.mxu0 0.0
    %154 = vmatpush1.msra.mxu0 0.0
    %155 = vmatprep.subr.mxu0 0.0
    %156 = vmatpush1.msra.mxu0 0.0
    %157 = vmatprep.mubr.f32.mxu0 0.0
    %158 = vmatmul.mubr.f32.gmra.mrb[0].mxu0 %v91
    %v159 = vpop.f32.mrb[0].mxu0
    %v160 = vadd.f32 0.0, %v159
    %v161 = vpop.f32.mrb[0].mxu0
    %162 = vdwg.mxu0
    %v163 = vmul.f32 %v160, %v160
    %164 = vadd.xlane.f32.xlu0 %v163
    %v165 = vpop.xlane.xlu0 %164
    %v166 = vmul.f32 %v84, %v84
    %v167 = vsel %vm89, %v166, 0.0
    %168 = vadd.xlane.f32.xlu0 %v167
    %v169 = vpop.xlane.xlu0 %168
    %v170 = vsub.f32 %v165, %v169
    %v171 = vmul.f32 %v170, 0.5
    %v172 = vld [vmem:[#allocation7] sm:$0xff]
    %v173 = vld [vmem:[#allocation7 + $0x8] sm:$0xff]
    %v174 = vld [vmem:[#allocation7 + $0x10] sm:$0xff]
    %v175 = vld [vmem:[#allocation7 + $0x18] sm:$0xff]
    %v176 = vld [vmem:[%s3] sm:$0x1]
    %v178 = vlaneseq
    %v179 = vshrl.u32 %v178, 7
    %v180 = vsub.s32 0, %v179
    %v181 = vrot.slane %v176, %v180
    %183 = vmatprep.subr.mxu0 0.0
    %184 = vmatpush1.msra.mxu0 %v172
    %185 = vmatprep.subr.mxu0 0.0
    %186 = vmatpush1.msra.mxu0 %v173
    %187 = vmatprep.subr.mxu0 0.0
    %188 = vmatpush1.msra.mxu0 %v174
    %189 = vmatprep.subr.mxu0 0.0
    %190 = vmatpush1.msra.mxu0 %v175
    %191 = vmatprep.subr.mxu0 0.0
    %192 = vmatpush1.msra.mxu0 0.0
    %193 = vmatprep.subr.mxu0 0.0
    %194 = vmatpush1.msra.mxu0 0.0
    %195 = vmatprep.subr.mxu0 0.0
    %196 = vmatpush1.msra.mxu0 0.0
    %197 = vmatprep.subr.mxu0 0.0
    %198 = vmatpush1.msra.mxu0 0.0
    %199 = vmatprep.subr.mxu0 0.0
    %200 = vmatpush1.msra.mxu0 0.0
    %201 = vmatprep.subr.mxu0 0.0
    %202 = vmatpush1.msra.mxu0 0.0
    %203 = vmatprep.subr.mxu0 0.0
    %204 = vmatpush1.msra.mxu0 0.0
    %205 = vmatprep.subr.mxu0 0.0
    %206 = vmatpush1.msra.mxu0 0.0
    %207 = vmatprep.subr.mxu0 0.0
    %208 = vmatpush1.msra.mxu0 0.0
    %209 = vmatprep.subr.mxu0 0.0
    %210 = vmatpush1.msra.mxu0 0.0
    %211 = vmatprep.subr.mxu0 0.0
    %212 = vmatpush1.msra.mxu0 0.0
    %213 = vmatprep.subr.mxu0 0.0
    %214 = vmatpush1.msra.mxu0 0.0
    %215 = vmatprep.subr.mxu0 0.0
    %216 = vmatpush1.msra.mxu0 0.0
    %217 = vmatprep.subr.mxu0 0.0
    %218 = vmatpush1.msra.mxu0 0.0
    %219 = vmatprep.subr.mxu0 0.0
    %220 = vmatpush1.msra.mxu0 0.0
    %221 = vmatprep.subr.mxu0 0.0
    %222 = vmatpush1.msra.mxu0 0.0
    %223 = vmatprep.subr.mxu0 0.0
    %224 = vmatpush1.msra.mxu0 0.0
    %225 = vmatprep.subr.mxu0 0.0
    %226 = vmatpush1.msra.mxu0 0.0
    %227 = vmatprep.subr.mxu0 0.0
    %228 = vmatpush1.msra.mxu0 0.0
    %229 = vmatprep.subr.mxu0 0.0
    %230 = vmatpush1.msra.mxu0 0.0
    %231 = vmatprep.subr.mxu0 0.0
    %232 = vmatpush1.msra.mxu0 0.0
    %233 = vmatprep.subr.mxu0 0.0
    %234 = vmatpush1.msra.mxu0 0.0
    %235 = vmatprep.subr.mxu0 0.0
    %236 = vmatpush1.msra.mxu0 0.0
    %237 = vmatprep.subr.mxu0 0.0
    %238 = vmatpush1.msra.mxu0 0.0
    %239 = vmatprep.subr.mxu0 0.0
    %240 = vmatpush1.msra.mxu0 0.0
    %241 = vmatprep.subr.mxu0 0.0
    %242 = vmatpush1.msra.mxu0 0.0
    %243 = vmatprep.subr.mxu0 0.0
    %244 = vmatpush1.msra.mxu0 0.0
    %245 = vmatprep.subr.mxu0 0.0
    %246 = vmatpush1.msra.mxu0 0.0
    %247 = vmatprep.mubr.f32.mxu0 0.0
    %248 = vmatmul.mubr.f32.gmra.mrb[0].mxu0 %v91
    %v249 = vpop.f32.mrb[0].mxu0
    %v250 = vadd.f32 %v181, %v249
    %v251 = vpop.f32.mrb[0].mxu0
    %252 = vdwg.mxu0
    %v253 = vmax.f32 %v250, 0.0
    %v254 = vld [vmem:[#allocation8] sm:$0xff]
    %v255 = vld [vmem:[#allocation8 + $0x8] sm:$0xff]
    %v256 = vld [vmem:[#allocation8 + $0x10] sm:$0xff]
    %v257 = vld [vmem:[#allocation8 + $0x18] sm:$0xff]
    %v258 = vld [vmem:[#allocation8 + $0x20] sm:$0xff]
    %v259 = vld [vmem:[#allocation8 + $0x28] sm:$0xff]
    %v260 = vld [vmem:[#allocation8 + $0x30] sm:$0xff]
    %v261 = vld [vmem:[#allocation8 + $0x38] sm:$0xff]
    %v262 = vld [vmem:[#allocation8 + $0x40] sm:$0xff]
    %v263 = vld [vmem:[#allocation8 + $0x48] sm:$0xff]
    %v264 = vld [vmem:[#allocation8 + $0x50] sm:$0xff]
    %v265 = vld [vmem:[#allocation8 + $0x58] sm:$0xff]
    %v266 = vld [vmem:[#allocation8 + $0x60] sm:$0xff]
    %v267 = vld [vmem:[#allocation8 + $0x68] sm:$0xff]
    %v268 = vld [vmem:[#allocation8 + $0x70] sm:$0xff]
    %v269 = vld [vmem:[#allocation8 + $0x78] sm:$0xff]
    %v270 = vld [vmem:[%s5] sm:$0x1]
    %v272 = vlaneseq
    %v273 = vshrl.u32 %v272, 7
    %v274 = vsub.s32 0, %v273
    %v275 = vrot.slane %v270, %v274
    %277 = vmatprep.subr.mxu0 0.0
    %278 = vmatpush1.msra.mxu0 %v254
    %279 = vmatprep.subr.mxu0 0.0
    %280 = vmatpush1.msra.mxu0 %v255
    %281 = vmatprep.subr.mxu0 0.0
    %282 = vmatpush1.msra.mxu0 %v256
    %283 = vmatprep.subr.mxu0 0.0
    %284 = vmatpush1.msra.mxu0 %v257
    %285 = vmatprep.subr.mxu0 0.0
    %286 = vmatpush1.msra.mxu0 %v258
    %287 = vmatprep.subr.mxu0 0.0
    %288 = vmatpush1.msra.mxu0 %v259
    %289 = vmatprep.subr.mxu0 0.0
    %290 = vmatpush1.msra.mxu0 %v260
    %291 = vmatprep.subr.mxu0 0.0
    %292 = vmatpush1.msra.mxu0 %v261
    %293 = vmatprep.subr.mxu0 0.0
    %294 = vmatpush1.msra.mxu0 %v262
    %295 = vmatprep.subr.mxu0 0.0
    %296 = vmatpush1.msra.mxu0 %v263
    %297 = vmatprep.subr.mxu0 0.0
    %298 = vmatpush1.msra.mxu0 %v264
    %299 = vmatprep.subr.mxu0 0.0
    %300 = vmatpush1.msra.mxu0 %v265
    %301 = vmatprep.subr.mxu0 0.0
    %302 = vmatpush1.msra.mxu0 %v266
    %303 = vmatprep.subr.mxu0 0.0
    %304 = vmatpush1.msra.mxu0 %v267
    %305 = vmatprep.subr.mxu0 0.0
    %306 = vmatpush1.msra.mxu0 %v268
    %307 = vmatprep.subr.mxu0 0.0
    %308 = vmatpush1.msra.mxu0 %v269
    %309 = vmatprep.subr.mxu0 0.0
    %310 = vmatpush1.msra.mxu0 0.0
    %311 = vmatprep.subr.mxu0 0.0
    %312 = vmatpush1.msra.mxu0 0.0
    %313 = vmatprep.subr.mxu0 0.0
    %314 = vmatpush1.msra.mxu0 0.0
    %315 = vmatprep.subr.mxu0 0.0
    %316 = vmatpush1.msra.mxu0 0.0
    %317 = vmatprep.subr.mxu0 0.0
    %318 = vmatpush1.msra.mxu0 0.0
    %319 = vmatprep.subr.mxu0 0.0
    %320 = vmatpush1.msra.mxu0 0.0
    %321 = vmatprep.subr.mxu0 0.0
    %322 = vmatpush1.msra.mxu0 0.0
    %323 = vmatprep.subr.mxu0 0.0
    %324 = vmatpush1.msra.mxu0 0.0
    %325 = vmatprep.subr.mxu0 0.0
    %326 = vmatpush1.msra.mxu0 0.0
    %327 = vmatprep.subr.mxu0 0.0
    %328 = vmatpush1.msra.mxu0 0.0
    %329 = vmatprep.subr.mxu0 0.0
    %330 = vmatpush1.msra.mxu0 0.0
    %331 = vmatprep.subr.mxu0 0.0
    %332 = vmatpush1.msra.mxu0 0.0
    %333 = vmatprep.subr.mxu0 0.0
    %334 = vmatpush1.msra.mxu0 0.0
    %335 = vmatprep.subr.mxu0 0.0
    %336 = vmatpush1.msra.mxu0 0.0
    %337 = vmatprep.subr.mxu0 0.0
    %338 = vmatpush1.msra.mxu0 0.0
    %339 = vmatprep.subr.mxu0 0.0
    %340 = vmatpush1.msra.mxu0 0.0
    %341 = vmatprep.mubr.f32.mxu0 0.0
    %342 = vmatmul.mubr.f32.gmra.mrb[0].mxu0 %v253
    %v343 = vpop.f32.mrb[0].mxu0
    %v344 = vadd.f32 %v275, %v343
    %v345 = vpop.f32.mrb[0].mxu0
    %346 = vdwg.mxu0
    %v347 = vmax.f32 %v344, 0.0
    %v348 = vld [vmem:[%s6] sm:$0x1]
    %v350 = vlaneseq
    %v351 = vshrl.u32 %v350, 7
    %v352 = vsub.s32 0, %v351
    %v353 = vrot.slane %v348, %v352
    %v355 = vmul.f32 %v347, %v353
    %356 = vadd.xlane.f32.xlu0 %v355
    %v357 = vpop.xlane.xlu0 %356
    %v358 = vld [vmem:[#allocation2] sm:$0x1]
    %v360 = vlaneseq
    %v361 = vshrl.u32 %v360, 7
    %v362 = vsub.s32 0, %v361
    %v363 = vrot.slane %v358, %v362
    %v365 = vadd.f32 %v357, %v363
    %v366 = vadd.f32 %v365, %v171
    %vm367 = vcmask 7168
    %368 = vst.msk [vmem:[%s8] sm:$0xff] %vm367, %v366
    // Predicated region
    $region50: #{tpu_custom_call.1} parent=1 // pred_check
      _
    $region51: #{tpu_custom_call.1} parent=1 // pred_check_branch
      %370 = sbr.rel (0) target = $region53
    $region52: #{tpu_custom_call.1} parent=1 // pred_region
      _
    $region53: #{tpu_custom_call.1} parent=1 // pred_fallthru
      _
    // Predicated region
    $region54: #{tpu_custom_call.1} parent=1 // pred_check
      _
    $region55: #{tpu_custom_call.1} parent=1 // pred_check_branch
      %372 = sbr.rel (0) target = $region57
    $region56: #{tpu_custom_call.1} parent=1 // pred_region
      _
    $region57: #{tpu_custom_call.1} parent=1 // pred_fallthru
      _
    %373 = vsyncpa [#allocation4], 1
    %374 = vsyncpa [#allocation6], 1
    %375 = vsyncpa [#allocation9], 1

</llo_original>
